<compile_context>
chip_gen: v5e
topology: v5e:2x2
jax: 0.10.0
libtpu: 0.0.40
codegen_flags: <defaults>
</compile_context>

<pallas_src>
import math

import numpy as np
import jax
import jax.numpy as jnp
from jax.experimental import pallas as pl
from jax.experimental.pallas import tpu as pltpu


_LANE = 128
# Per-tile input budget.  Double-buffered => ~4 MiB of VMEM for the streaming
# input, leaving plenty of headroom under the v5e 16 MiB scoped default and
# the v7x 64 MiB physical VMEM.
_TILE_BYTES = 2 * 1024 * 1024


def _round_up(x, m):
    return ((x + m - 1) // m) * m


def _choose_tile_rows(c_pad, itemsize, max_rows, tile_rows=None):
    """Pick the row-tile size TM (multiple of 32, VMEM-budget aware)."""
    if tile_rows is not None:
        return max(32, _round_up(int(tile_rows), 32))
    tm = _TILE_BYTES // max(c_pad * itemsize, 1)
    tm = max(32, (tm // 32) * 32)
    tm = min(tm, 512)
    # Don't pad small weights beyond the largest weight's row count.
    tm = min(tm, _round_up(max_rows, 32))
    return tm


def _make_stats_kernel(need_abs, need_sq, need_col):
    """Kernel specialized on which reductions p actually needs."""

    def kernel(offs_ref, ntiles_ref, w_ref, out_ref, *scratch):
        it = iter(scratch)
        abs_acc = next(it) if need_abs else None
        sq_acc = next(it) if need_sq else None
        col_acc = next(it) if need_col else None

        w_id = pl.program_id(0)        # which weight tensor
        i = pl.program_id(1)           # row tile within that weight
        nt = ntiles_ref[w_id]          # number of real row tiles for this weight

        @pl.when(i == 0)
        def _init():
            if need_abs:
                abs_acc[...] = jnp.zeros_like(abs_acc)
            if need_sq:
                sq_acc[...] = jnp.zeros_like(sq_acc)
            if need_col:
                col_acc[...] = jnp.zeros_like(col_acc)

        @pl.when(i < nt)               # clamped (ragged) steps do no work
        def _accumulate():
            w = w_ref[...].astype(jnp.float32)
            if need_abs:
                abs_acc[...] += jnp.sum(jnp.abs(w), axis=(0, 1), keepdims=True)
            if need_sq or need_col:
                sq = w * w
                if need_sq:
                    sq_acc[...] += jnp.sum(sq, axis=(0, 1), keepdims=True)
                if need_col:
                    col_acc[...] += jnp.sum(sq, axis=0, keepdims=True)

        @pl.when(i == nt - 1)
        def _finalize():
            # Single lane-dense store per weight: lanes 0/1/2 = abs, sq, col_l2.
            lane = jax.lax.broadcasted_iota(jnp.int32, (8, _LANE), 1)
            out = jnp.zeros((8, _LANE), jnp.float32)
            if need_abs:
                out = out + jnp.where(lane == 0, abs_acc[...], 0.0)
            if need_sq:
                out = out + jnp.where(lane == 1, sq_acc[...], 0.0)
            if need_col:
                # sqrt only after the column sums are FULLY accumulated.
                col_l2 = jnp.sum(jnp.sqrt(col_acc[...]), axis=1, keepdims=True)
                out = out + jnp.where(lane == 2, col_l2, 0.0)
            out_ref[...] = out[None]

    return kernel


def _fused_weight_stats(weights_2d, p, tile_rows=None):
    """One fused pallas_call over all 2-D weight slabs of a common dtype.

    Returns an (N, 3) f32 array with [:,0]=sum|W|, [:,1]=sum W^2,
    [:,2]=sum_c ||W[:,c]||_2 (only the stats p needs are populated).
    """
    need_abs = p in (1, 4, 5)
    need_sq = p == 2
    need_col = p in (3, 4, 5)

    dtype = weights_2d[0].dtype
    itemsize = jnp.dtype(dtype).itemsize
    c_pad = max(_round_up(w.shape[1], _LANE) for w in weights_2d)
    max_rows = max(w.shape[0] for w in weights_2d)
    tm = _choose_tile_rows(c_pad, itemsize, max_rows, tile_rows)
    # TODO(synk): extremely wide weights (32 * C_pad * itemsize > VMEM budget)
    # would additionally need column tiling with a full-width col_sq scratch.

    slabs, ntiles, offs = [], [], []
    row_block_off = 0
    for w in weights_2d:
        r, c = w.shape
        nt = (r + tm - 1) // tm
        slabs.append(jnp.pad(w, ((0, nt * tm - r), (0, c_pad - c))))
        ntiles.append(nt)
        offs.append(row_block_off)
        row_block_off += nt

    fused = jnp.concatenate(slabs, axis=0) if len(slabs) > 1 else slabs[0]
    n_w = len(weights_2d)
    t_max = max(ntiles)
    offs_arr = jnp.asarray(offs, dtype=jnp.int32)
    ntiles_arr = jnp.asarray(ntiles, dtype=jnp.int32)

    scratch_shapes = []
    if need_abs:
        scratch_shapes.append(pltpu.VMEM((1, 1), jnp.float32))
    if need_sq:
        scratch_shapes.append(pltpu.VMEM((1, 1), jnp.float32))
    if need_col:
        scratch_shapes.append(pltpu.VMEM((1, c_pad), jnp.float32))

    def w_index_map(w_idx, i, offs_ref, ntiles_ref):
        # Clamp ragged weights to their last real tile (Pallas skips the
        # re-copy when the block index is unchanged; compute is gated).
        return (offs_ref[w_idx] + jnp.minimum(i, ntiles_ref[w_idx] - 1), 0)

    def out_index_map(w_idx, i, offs_ref, ntiles_ref):
        return (w_idx, 0, 0)

    stats = pl.pallas_call(
        _make_stats_kernel(need_abs, need_sq, need_col),
        out_shape=jax.ShapeDtypeStruct((n_w, 8, _LANE), jnp.float32),
        grid_spec=pltpu.PrefetchScalarGridSpec(
            num_scalar_prefetch=2,
            grid=(n_w, t_max),
            in_specs=[pl.BlockSpec((tm, c_pad), w_index_map)],
            out_specs=pl.BlockSpec((1, 8, _LANE), out_index_map),
            scratch_shapes=scratch_shapes,
        ),
        compiler_params=pltpu.CompilerParams(
            dimension_semantics=("parallel", "arbitrary"),
        ),
    )(offs_arr, ntiles_arr, fused)

    return stats[:, 0, :3]


def regularization_loss(weight_list, weight_decay, p, tile_rows=None):
    """Pallas-backed equivalent of Regularization.regularization_loss.

    weight_list : list of (name, array) pairs (only 'weight' params, any rank).
    Weights keep their native dtype end-to-end; the kernel casts in VMEM.
    """
    if p not in (1, 2, 3, 4, 5):
        return jnp.float32(0.0)

    # Group by dtype so each fused buffer stays in its native dtype
    # (no wrapper-side f32 upcast => half the HBM traffic for bf16 params).
    groups = {}
    for _name, w in weight_list:
        w2d = jnp.reshape(w, (w.shape[0], -1))
        groups.setdefault(jnp.dtype(w2d.dtype).name, []).append((w.shape[0], w2d))

    total = jnp.float32(0.0)
    for _dt, items in groups.items():
        dim0s = np.asarray([d for d, _ in items], dtype=np.float32)
        w2ds = [w for _, w in items]
        stats = _fused_weight_stats(w2ds, p, tile_rows=tile_rows)
        abs_s, sq_s, col_l2 = stats[:, 0], stats[:, 1], stats[:, 2]
        if p == 1:
            per_w = abs_s
        elif p == 2:
            per_w = jnp.sqrt(sq_s)
        elif p == 3:
            per_w = col_l2
        elif p == 4:
            per_w = jnp.asarray(np.sqrt(dim0s)) * col_l2 + abs_s
        else:  # p == 5:  || ||W||_1(dim=0) ||_1 == sum(|W|)
            per_w = abs_s + col_l2
        total = total + jnp.sum(per_w)
    return jnp.float32(weight_decay) * total


def _reference_loss(weight_list, weight_decay, p):
    """Pure-jnp reference mirroring the PyTorch code (for self-check)."""
    reg_loss = jnp.float32(0.0)
    for _name, w in weight_list:
        w = w.astype(jnp.float32)
        if p == 1:
            l1, l2 = jnp.sum(jnp.abs(w)), 0.0
        elif p == 2:
            l1, l2 = jnp.sqrt(jnp.sum(w * w)), 0.0
        elif p == 3:
            tmp = jnp.sqrt(jnp.sum(w * w, axis=0))
            l1, l2 = jnp.sum(jnp.abs(tmp)), 0.0
        elif p == 4:
            tmp = jnp.sqrt(jnp.sum(w * w, axis=0))
            l1 = math.sqrt(w.shape[0]) * jnp.sum(jnp.abs(tmp))
            l2 = jnp.sum(jnp.abs(w))
        elif p == 5:
            tmp2 = jnp.sqrt(jnp.sum(w * w, axis=0))
            tmp1 = jnp.sum(jnp.abs(w), axis=0)
            l2 = jnp.sum(jnp.abs(tmp2))
            l1 = jnp.sum(jnp.abs(tmp1))
        else:
            l1, l2 = 0.0, 0.0
        reg_loss = reg_loss + l1 + l2
    return jnp.float32(weight_decay) * reg_loss


if __name__ == "__main__":
    key = jax.random.PRNGKey(0)
    k1, k2, k3, k4, k5 = jax.random.split(key, 5)

    # Synthetic "model" weights (deterministic, small shapes; mixed ranks/dtypes).
    weight_list = [
        ("fc1.weight", jax.random.normal(k1, (32, 16), dtype=jnp.float32)),
        ("fc2.weight", jax.random.normal(k2, (4, 32), dtype=jnp.float32)),
        ("conv.weight", jax.random.normal(k3, (4, 4, 3, 3), dtype=jnp.float32)),
        ("embed.weight", jax.random.normal(k4, (96, 40), dtype=jnp.float32)),
        ("norm.weight",
         jax.random.normal(k5, (32,), dtype=jnp.float32).astype(jnp.bfloat16)),
    ]

    weight_decay = 0.01
    ok = True
    for p in (1, 2, 3, 4, 5):
        ref = _reference_loss(weight_list, weight_decay, p)
        # tile_rows=None: auto (single-tile path); tile_rows=32: forces the
        # multi-row-tile accumulation + ragged-grid path to be exercised.
        for tile_rows in (None, 32):
            out = regularization_loss(weight_list, weight_decay, p,
                                      tile_rows=tile_rows)
            out = jax.block_until_ready(out)
            if not bool(jnp.allclose(out, ref, rtol=2e-5, atol=1e-3)):
                ok = False
                print(f"MISMATCH p={p} tile_rows={tile_rows}: {out} vs {ref}")

    if ok:
        print("KERNEL_OK")
</pallas_src>

<mosaic_0001>
module attributes {stable_mosaic.version = 11 : i64} {
  func.func @kernel(%arg0: i32, %arg1: i32, %arg2: memref<4xi32, #tpu.memory_space<smem>>, %arg3: memref<4xi32, #tpu.memory_space<smem>>, %arg4: memref<96x128xf32, #tpu.memory_space<vmem>>, %arg5: memref<1x8x128xf32, #tpu.memory_space<vmem>>, %arg6: memref<1x1xf32, #tpu.memory_space<vmem>>) attributes {dimension_semantics = [#tpu.dimension_semantics<parallel>, #tpu.dimension_semantics<arbitrary>], iteration_bounds = array<i64: 4, 1>, scalar_prefetch = 2 : i64, scratch_operands = 1 : i64, tpu.core_type = #tpu.core_type<tc>, window_params = [{transform_indices = @transform_0, window_bounds = array<i64: 96, 128>}, {transform_indices = @transform_1, window_bounds = array<i64: 1, 8, 128>}]} {
    %0 = arith.index_cast %arg0 : i32 to index
    %1 = memref.load %arg3[%0] : memref<4xi32, #tpu.memory_space<smem>>
    %c0_i32 = arith.constant 0 : i32
    %2 = arith.cmpi eq, %arg1, %c0_i32 : i32
    %3 = arith.extui %2 : i1 to i32
    %c0_i32_0 = arith.constant 0 : i32
    %4 = arith.cmpi ne, %3, %c0_i32_0 : i32
    scf.if %4 {
      %cst = arith.constant 0.000000e+00 : f32
      %12 = vector.broadcast %cst : f32 to vector<1x1xf32>
      %c0 = arith.constant 0 : index
      %c0_3 = arith.constant 0 : index
      %13 = vector.load %arg6[%c0, %c0_3] : memref<1x1xf32, #tpu.memory_space<vmem>>, vector<1x1xf32>
      tpu.vector_store %arg6[%c0, %c0_3], %12 {strides = array<i32>} : memref<1x1xf32, #tpu.memory_space<vmem>>, vector<1x1xf32>,
    } else {
    }
    %5 = arith.cmpi slt, %arg1, %1 : i32
    %6 = arith.extui %5 : i1 to i32
    %c0_i32_1 = arith.constant 0 : i32
    %7 = arith.cmpi ne, %6, %c0_i32_1 : i32
    scf.if %7 {
      %c0 = arith.constant 0 : index
      %c0_3 = arith.constant 0 : index
      %12 = vector.load %arg4[%c0, %c0_3] : memref<96x128xf32, #tpu.memory_space<vmem>>, vector<96x128xf32>
      %c0_4 = arith.constant 0 : index
      %c0_5 = arith.constant 0 : index
      %13 = vector.load %arg6[%c0_4, %c0_5] : memref<1x1xf32, #tpu.memory_space<vmem>>, vector<1x1xf32>
      %14 = math.absf %12 : vector<96x128xf32>
      %15 = vector.shape_cast %14 : vector<96x128xf32> to vector<1x96x128xf32>
      %cst = arith.constant dense<0.000000e+00> : vector<1xf32>
      %16 = vector.multi_reduction <add>, %15, %cst [1, 2] : vector<1x96x128xf32> to vector<1xf32>
      %17 = vector.shape_cast %16 : vector<1xf32> to vector<1x1x1xf32>
      %18 = vector.extract %17[0, 0, 0] : f32 from vector<1x1x1xf32>
      %19 = vector.broadcast %18 : f32 to vector<1x1xf32>
      %20 = arith.addf %13, %19 : vector<1x1xf32>
      %c0_6 = arith.constant 0 : index
      %c0_7 = arith.constant 0 : index
      %21 = vector.load %arg6[%c0_6, %c0_7] : memref<1x1xf32, #tpu.memory_space<vmem>>, vector<1x1xf32>
      tpu.vector_store %arg6[%c0_6, %c0_7], %20 {strides = array<i32>} : memref<1x1xf32, #tpu.memory_space<vmem>>, vector<1x1xf32>,
    } else {
    }
    %c1_i32 = arith.constant 1 : i32
    %8 = arith.subi %1, %c1_i32 : i32
    %9 = arith.cmpi eq, %arg1, %8 : i32
    %10 = arith.extui %9 : i1 to i32
    %c0_i32_2 = arith.constant 0 : i32
    %11 = arith.cmpi ne, %10, %c0_i32_2 : i32
    scf.if %11 {
      %12 = tpu.iota {dimensions = array<i32: 1>} : vector<8x128xi32>
      %cst = arith.constant 0.000000e+00 : f32
      %13 = vector.broadcast %cst : f32 to vector<8x128xf32>
      %c0_i32_3 = arith.constant 0 : i32
      %14 = vector.broadcast %c0_i32_3 : i32 to vector<8x128xi32>
      %15 = arith.cmpi eq, %12, %14 : vector<8x128xi32>
      %c0 = arith.constant 0 : index
      %c0_4 = arith.constant 0 : index
      %16 = vector.load %arg6[%c0, %c0_4] : memref<1x1xf32, #tpu.memory_space<vmem>>, vector<1x1xf32>
      %cst_5 = arith.constant 0.000000e+00 : f32
      %17 = vector.shape_cast %16 : vector<1x1xf32> to vector<1x1xf32>
      %18 = vector.broadcast %17 : vector<1x1xf32> to vector<8x128xf32>
      %19 = vector.broadcast %cst_5 : f32 to vector<8x128xf32>
      %20 = arith.select %15, %18, %19 : vector<8x128xi1>, vector<8x128xf32>
      %21 = arith.addf %13, %20 : vector<8x128xf32>
      %22 = vector.shape_cast %21 : vector<8x128xf32> to vector<1x8x128xf32>
      %c0_6 = arith.constant 0 : index
      %c0_7 = arith.constant 0 : index
      %c0_8 = arith.constant 0 : index
      %23 = vector.load %arg5[%c0_6, %c0_7, %c0_8] : memref<1x8x128xf32, #tpu.memory_space<vmem>>, vector<1x8x128xf32>
      tpu.vector_store %arg5[%c0_6, %c0_7, %c0_8], %22 {strides = array<i32>} : memref<1x8x128xf32, #tpu.memory_space<vmem>>, vector<1x8x128xf32>,
    } else {
    }
    return
  }
  func.func @transform_0(%arg0: i32, %arg1: i32, %arg2: memref<4xi32, #tpu.memory_space<smem>>, %arg3: memref<4xi32, #tpu.memory_space<smem>>) -> (i32, i32) {
    %0 = arith.index_cast %arg0 : i32 to index
    %1 = memref.load %arg2[%0] : memref<4xi32, #tpu.memory_space<smem>>
    %2 = arith.index_cast %arg0 : i32 to index
    %3 = memref.load %arg3[%2] : memref<4xi32, #tpu.memory_space<smem>>
    %c1_i32 = arith.constant 1 : i32
    %4 = arith.subi %3, %c1_i32 : i32
    %5 = arith.minsi %arg1, %4 : i32
    %6 = arith.addi %1, %5 : i32
    %c0_i32 = arith.constant 0 : i32
    %c0_i32_0 = arith.constant 0 : i32
    return %6, %c0_i32 : i32, i32
  }
  func.func @transform_1(%arg0: i32, %arg1: i32, %arg2: memref<4xi32, #tpu.memory_space<smem>>, %arg3: memref<4xi32, #tpu.memory_space<smem>>) -> (i32, i32, i32) {
    %c0_i32 = arith.constant 0 : i32
    %c0_i32_0 = arith.constant 0 : i32
    %c0_i32_1 = arith.constant 0 : i32
    return %arg0, %c0_i32, %c0_i32_0 : i32, i32, i32
  }
}

</mosaic_0001>

<llo_original>
// kernel: tpu_custom_call.1
$region0: #{tpu_custom_call.1}
  #allocation0 [shape = 'u32[]', space=smem, size = 0x4, offset = 0x4, fixed_abs, tag = 'smem constant byte address 0x4 - core index']
  #allocation1 [shape = 'u32[72,128]{1,0:T(1,128)}', space=vmem, size = 0x9000, scoped, tag = 'internal scratch']
  #allocation2 [shape = 'f32[1,1]{1,0:T(1,128)}', space=vmem, size = 0x200, scoped, tag = 'scratch operand']
  #allocation3 [shape = 's32[1]{0}', space=sflag, size = 0x4, scoped, tag = 'scoped memory for tpu_custom_call.1']
  #allocation4 [shape = 'u8[512]{0}', space=smem, size = 0x200, scoped, tag = 'prefetched SMEM operand 0']
  #allocation5 [shape = 'u8[512]{0}', space=smem, size = 0x200, scoped, tag = 'prefetched SMEM operand 1']
  %s0 = inlined_call_operand.hbm [shape: s32[4], index: 0, kind: input, shape index: {}]
  %s1 = inlined_call_operand.hbm [shape: s32[4], index: 1, kind: input, shape index: {}]
  %s2 = inlined_call_operand.hbm [shape: f32[384,128], index: 2, kind: input, shape index: {}]
  %s3 = inlined_call_operand.hbm [shape: f32[4,8,128], index: 3, kind: output, shape index: {}]
  %s4 = sld [smem:[#allocation0]]
  $region53: #{tpu_custom_call.1} parent=0
    _
  %s6 = ssub.s32 1, %s4
  %s7 = scalar_select 0, %s6, %s4
  %s9 = sshll.u32 %s0, 4
  %s10 = int_to_ptr.hbm [resolvable:$true] %s9
  %12 = dma.hbm_to_smem %s10, 16, [#allocation4], [#allocation3]
  %s14 = sshll.u32 %s1, 4
  %s15 = int_to_ptr.hbm [resolvable:$true] %s14
  %17 = dma.hbm_to_smem %s15, 16, [#allocation5], [#allocation3]
  %19 = dma.done [#allocation3], 32
  %20 = sfence
  $region1: #{tpu_custom_call.1} parent=0
    #allocation6 [shape = 'u8[98304]{0}', space=vmem, size = 0x18000, scoped, tag = 'input window, operand 2']
    #allocation7 [shape = 's32[2]{0}', space=sflag, size = 0x8, scoped, tag = 'scoped memory for tpu_custom_call.1']
    #allocation8 [shape = 's32[2]{0}', space=sflag, size = 0x8, scoped, tag = 'scoped memory for tpu_custom_call.1']
    #allocation9 [shape = 'u8[8192]{0}', space=vmem, size = 0x2000, scoped, tag = 'output window, operand 0']
    %21 = vsyncpa [#allocation7], 0
    %s22 = scalar_lea.sflag [#allocation7], 1
    %23 = vsyncpa %s22, 0
    %24 = vsyncpa [#allocation8], 0
    %s25 = scalar_lea.sflag [#allocation8], 1
    %26 = vsyncpa %s25, 0
    loop: start=0, step=1, limit=6
    $region2: #{tpu_custom_call.1} parent=1 // loop_pre_header
      _
    $region3: #{tpu_custom_call.1} parent=1 // loop_header
      %s28 = sphi 0, %s32
      %p29 = scmp.ge.s32.totalorder %s28, 6
      %s35 = sphi 0, %s47
      %s36 = sphi 0, %s43
      %s37 = sphi 0, %s35
      %s38 = sphi 0, %s36
      %s39 = sphi 0, %s37
      %s40 = sphi 0, %s38
      %s62 = sphi 0, %s64
      %s65 = sphi 0, %s62
      %s66 = sphi 0, %s65
      %s82 = sphi 0, %s66
      %s88 = sphi 0, %s90
      %s91 = sphi 0, %s88
      %s92 = sphi 0, %s91
      %s108 = sphi 0, %s92
    $region4: #{tpu_custom_call.1} parent=1 // loop_header_branch
      %31 = sbr.rel (%p29) target = $region8
    $region5: #{tpu_custom_call.1} parent=1 // loop_body
      %s33 = ssub.s32 %s28, 1
      %s34 = ssub.s32 %s28, 2
      %s41 = sadd.s32 1, %s36
      %p42 = scmp.ge.s32.totalorder %s41, 1
      %s43 = scalar_select %p42, 0, %s41
      %s44 = sadd.s32 1, %s35
      %s45 = scalar_select %p42, %s44, %s35
      %p46 = scmp.ge.s32.totalorder %s45, 4
      %s47 = scalar_select %p46, 0, %s45
      %s48 = sld [smem:[#allocation4 + %s35]]
      %s49 = sld [smem:[#allocation5 + %s35]]
      %s50 = ssub.s32 %s49, 1
      %p51 = scmp.lt.s32.totalorder %s36, %s50
      %s52 = scalar_select %p51, %s36, %s50
      %s53 = sadd.s32 %s48, %s52
      %s54 = sld [smem:[#allocation4 + %s47]]
      %s55 = sld [smem:[#allocation5 + %s47]]
      %s56 = ssub.s32 %s55, 1
      %p57 = scmp.lt.s32.totalorder %s43, %s56
      %s58 = scalar_select %p57, %s43, %s56
      %s59 = sadd.s32 %s54, %s58
      %s60 = ssub.s32 %s53, %s59
      %p61 = scmp.eq.s32.totalorder %s60, 0
      %s63 = sadd.s32 %s62, 1
      %s64 = scalar_select %p61, %s62, %s63
      %p67 = pneg %p61
      %p68 = scmp.eq.s32.totalorder %s28, 3
      %p69 = por %p67, %p68
      %p70 = scmp.ne.s32.totalorder %s62, %s65
      %p71 = scmp.eq.s32.totalorder %s28, 0
      %p72 = por %p70, %p71
      %p73 = scmp.ne.s32.totalorder %s62, %s65
      %p74 = scmp.eq.s32.totalorder %s33, 3
      %p75 = por %p73, %p74
      %p76 = scmp.ne.s32.totalorder %s65, %s66
      %p77 = scmp.eq.s32.totalorder %s33, 0
      %p78 = por %p76, %p77
      %p79 = scmp.ne.s32.totalorder %s65, %s66
      %p80 = scmp.eq.s32.totalorder %s34, 3
      %p81 = por %p79, %p80
      %p83 = scmp.ne.s32.totalorder %s66, %s82
      %p84 = scmp.eq.s32.totalorder %s34, 0
      %p85 = por %p83, %p84
      %s86 = ssub.s32 %s35, %s47
      %p87 = scmp.eq.s32.totalorder %s86, 0
      %s89 = sadd.s32 %s88, 1
      %s90 = scalar_select %p87, %s88, %s89
      %p93 = pneg %p87
      %p94 = scmp.eq.s32.totalorder %s28, 3
      %p95 = por %p93, %p94
      %p96 = scmp.ne.s32.totalorder %s88, %s91
      %p97 = scmp.eq.s32.totalorder %s28, 0
      %p98 = por %p96, %p97
      %p99 = scmp.ne.s32.totalorder %s88, %s91
      %p100 = scmp.eq.s32.totalorder %s33, 3
      %p101 = por %p99, %p100
      %p102 = scmp.ne.s32.totalorder %s91, %s92
      %p103 = scmp.eq.s32.totalorder %s33, 0
      %p104 = por %p102, %p103
      %p105 = scmp.ne.s32.totalorder %s91, %s92
      %p106 = scmp.eq.s32.totalorder %s34, 3
      %p107 = por %p105, %p106
      %p109 = scmp.ne.s32.totalorder %s92, %s108
      %p110 = scmp.eq.s32.totalorder %s34, 0
      %p111 = por %p109, %p110
      %p112 = scmp.le.s32.totalorder 1, %s28
      %p113 = scmp.lt.s32.totalorder %s28, 5
      %p114 = pnand %p112, %p113
      %p115 = pneg %p114
      // Predicated region
      $region9: #{tpu_custom_call.1} parent=5 // pred_check
        _
      $region10: #{tpu_custom_call.1} parent=5 // pred_check_branch
        %117 = sbr.rel (%p114) target = $region12
      $region11: #{tpu_custom_call.1} parent=5 // pred_region
        %s118 = ssub.s32 %s28, 1
      $region12: #{tpu_custom_call.1} parent=5 // pred_fallthru
        _
      %p119 = scmp.lt.s32.totalorder %s28, 4
      // Predicated region
      $region13: #{tpu_custom_call.1} parent=5 // pred_check
        %p120 = pneg %p119
      $region14: #{tpu_custom_call.1} parent=5 // pred_check_branch
        %122 = sbr.rel (%p120) target = $region16
      $region15: #{tpu_custom_call.1} parent=5 // pred_region
        // Predicated region
        $region17: #{tpu_custom_call.1} parent=15 // pred_check
          %p123 = pneg %p72
        $region18: #{tpu_custom_call.1} parent=15 // pred_check_branch
          %125 = sbr.rel (%p123) target = $region20
        $region19: #{tpu_custom_call.1} parent=15 // pred_region
          %s126 = sand.u32 %s62, 1
          %s127 = scalar_lea.sflag [#allocation7], %s126
          %s128 = sand.u32 %s62, 1
          %s129 = smul.addr %s128, 96
          %s130 = scalar_lea.vmem [#allocation6], %s129
          %s131 = sld [smem:[#allocation4 + %s35]]
          %s132 = sld [smem:[#allocation5 + %s35]]
          %s133 = ssub.s32 %s132, 1
          %p134 = scmp.lt.s32.totalorder %s36, %s133
          %s135 = scalar_select %p134, %s36, %s133
          %s136 = sadd.s32 %s131, %s135
          %s137 = smul.u32 12, %s136
          %139 = vsyncadd %s127, 0
          %s140 = smul.addr %s137, 8
          %s141 = scalar_lea.hbm %s2, %s140
          %s142 = sshll.u32 %s141, 4
          %s143 = int_to_ptr.hbm [resolvable:$true] %s142
          %s144 = sshll.u32 %s130, 4
          %s145 = int_to_ptr.vmem [resolvable:$true] %s144
          %150 = dma.hbm_to_vmem [thread:$0]  %s143, 1536, %s145, %s127, 128, 128, 8
        $region20: #{tpu_custom_call.1} parent=15 // pred_fallthru
          _
      $region16: #{tpu_custom_call.1} parent=5 // pred_fallthru
        _
      %p151 = scmp.le.s32.totalorder 1, %s28
      %p152 = scmp.lt.s32.totalorder %s28, 5
      %p153 = pnand %p151, %p152
      %p154 = pneg %p153
      // Predicated region
      $region21: #{tpu_custom_call.1} parent=5 // pred_check
        _
      $region22: #{tpu_custom_call.1} parent=5 // pred_check_branch
        %156 = sbr.rel (%p153) target = $region24
      $region23: #{tpu_custom_call.1} parent=5 // pred_region
        %s157 = ssub.s32 %s28, 1
        %s158 = sand.u32 %s65, 1
        %s159 = scalar_lea.sflag [#allocation7], %s158
        %s160 = sand.u32 %s65, 1
        %s161 = smul.addr %s160, 96
        %s162 = scalar_lea.vmem [#allocation6], %s161
        // Predicated region
        $region25: #{tpu_custom_call.1} parent=23 // pred_check
          %p163 = pneg %p78
        $region26: #{tpu_custom_call.1} parent=23 // pred_check_branch
          %165 = sbr.rel (%p163) target = $region28
        $region27: #{tpu_custom_call.1} parent=23 // pred_region
          %167 = dma.done %s159, 1536
        $region28: #{tpu_custom_call.1} parent=23 // pred_fallthru
          _
        %s168 = sand.u32 %s65, 1
        %s169 = scalar_lea.sflag [#allocation7], %s168
        %s170 = sand.u32 %s65, 1
        %s171 = smul.addr %s170, 96
        %s172 = scalar_lea.vmem [#allocation6], %s171
        %p173 = pneg %p78
        %p174 = pneg %p75
        %p175 = pneg %p104
        %p176 = pneg %p101
        %s177 = sand.u32 %s91, 1
        %s178 = scalar_lea.sflag [#allocation8], %s177
        %s179 = sand.u32 %s91, 1
        %s180 = smul.addr %s179, 8
        %s181 = scalar_lea.vmem [#allocation9], %s180
        %s182 = sld [smem:[#allocation4 + %s37]]
        %s183 = sld [smem:[#allocation5 + %s37]]
        %s184 = ssub.s32 %s183, 1
        %p185 = scmp.lt.s32.totalorder %s38, %s184
        %s186 = scalar_select %p185, %s38, %s184
        %s187 = sadd.s32 %s182, %s186
        %s188 = smul.u32 12, %s187
        %s189 = sld [smem:[#allocation5 + %s37]]
        %p190 = scmp.eq.s32.totalorder %s38, 0
        // Predicated region
        $region29: #{tpu_custom_call.1} parent=23 // pred_check
          %p191 = pneg %p190
        $region30: #{tpu_custom_call.1} parent=23 // pred_check_branch
          %193 = sbr.rel (%p191) target = $region32
        $region31: #{tpu_custom_call.1} parent=23 // pred_region
          %vm194 = vcmask 0
          %195 = vst.msk [vmem:[#allocation2] sm:$0x1] %vm194, 0.0
        $region32: #{tpu_custom_call.1} parent=23 // pred_fallthru
          _
        %p196 = scmp.lt.s32.totalorder %s38, %s189
        // Predicated region
        $region33: #{tpu_custom_call.1} parent=23 // pred_check
          %p197 = pneg %p196
        $region34: #{tpu_custom_call.1} parent=23 // pred_check_branch
          %199 = sbr.rel (%p197) target = $region36
        $region35: #{tpu_custom_call.1} parent=23 // pred_region
          %v200 = vld [vmem:[%s162] sm:$0xff]
          %v201 = vld [vmem:[%s162 + $0x8] sm:$0xff]
          %v202 = vld [vmem:[%s162 + $0x10] sm:$0xff]
          %v203 = vld [vmem:[%s162 + $0x18] sm:$0xff]
          %v204 = vld [vmem:[%s162 + $0x20] sm:$0xff]
          %v205 = vld [vmem:[%s162 + $0x28] sm:$0xff]
          %v206 = vld [vmem:[%s162 + $0x30] sm:$0xff]
          %v207 = vld [vmem:[%s162 + $0x38] sm:$0xff]
          %v208 = vld [vmem:[%s162 + $0x40] sm:$0xff]
          %v209 = vld [vmem:[%s162 + $0x48] sm:$0xff]
          %v210 = vld [vmem:[%s162 + $0x50] sm:$0xff]
          %v211 = vld [vmem:[%s162 + $0x58] sm:$0xff]
          %v212 = vld [vmem:[#allocation2] sm:$0x1]
          %v213 = vand.u32 2147483647, %v200
          %v214 = vand.u32 2147483647, %v201
          %v215 = vand.u32 2147483647, %v202
          %v216 = vand.u32 2147483647, %v203
          %v217 = vand.u32 2147483647, %v204
          %v218 = vand.u32 2147483647, %v205
          %v219 = vand.u32 2147483647, %v206
          %v220 = vand.u32 2147483647, %v207
          %v221 = vand.u32 2147483647, %v208
          %v222 = vand.u32 2147483647, %v209
          %v223 = vand.u32 2147483647, %v210
          %v224 = vand.u32 2147483647, %v211
          %v225 = vadd.f32 %v213, %v214
          %v226 = vadd.f32 %v225, %v215
          %v227 = vadd.f32 %v226, %v216
          %v228 = vadd.f32 %v227, %v217
          %v229 = vadd.f32 %v228, %v218
          %v230 = vadd.f32 %v229, %v219
          %v231 = vadd.f32 %v230, %v220
          %v232 = vadd.f32 %v231, %v221
          %v233 = vadd.f32 %v232, %v222
          %v234 = vadd.f32 %v233, %v223
          %v235 = vadd.f32 %v234, %v224
          %236 = vadd.xlane.f32.xlu0 %v235
          %v237 = vpop.xlane.xlu0 %236
          %v238 = vrot.slane %v237, 4
          %v239 = vadd.f32 %v237, %v238
          %v240 = vrot.slane %v239, 2
          %v241 = vadd.f32 %v239, %v240
          %v242 = vrot.slane %v241, 1
          %v243 = vadd.f32 %v241, %v242
          %s244 = vtos %v243
          %v245 = vstv %s244
          %v246 = vadd.f32 %v212, %v245
          %vm247 = vcmask 0
          %248 = vst.msk [vmem:[#allocation2] sm:$0x1] %vm247, %v246
        $region36: #{tpu_custom_call.1} parent=23 // pred_fallthru
          _
        %s249 = ssub.s32 %s189, 1
        %p250 = scmp.eq.s32.totalorder %s38, %s249
        // Predicated region
        $region37: #{tpu_custom_call.1} parent=23 // pred_check
          %p251 = pneg %p250
        $region38: #{tpu_custom_call.1} parent=23 // pred_check_branch
          %253 = sbr.rel (%p251) target = $region40
        $region39: #{tpu_custom_call.1} parent=23 // pred_region
          %v254 = vlaneseq
          %v255 = vand.u32 %v254, 127
          %vm256 = vcmp.eq.s32.totalorder %v255, 0
          %v257 = vld [vmem:[#allocation2] sm:$0x1]
          %v259 = vperm.slane %v257, 0
          %260 = vset.pattern.permute.xlu0 0
          %261 = vperm.xlu0 %260, %v259
          %v262 = vpop.permute.xlu0 %261
          %v264 = vsel %vm256, %v262, 0.0
          %v265 = vadd.f32 %v264, 0.0
          %266 = vst [vmem:[%s181] sm:$0xff] %v265
        $region40: #{tpu_custom_call.1} parent=23 // pred_fallthru
          _
        %s267 = sand.u32 %s91, 1
        %s268 = scalar_lea.sflag [#allocation8], %s267
        %s269 = sand.u32 %s91, 1
        %s270 = smul.addr %s269, 8
        %s271 = scalar_lea.vmem [#allocation9], %s270
        // Predicated region
        $region41: #{tpu_custom_call.1} parent=23 // pred_check
          %p272 = pneg %p101
        $region42: #{tpu_custom_call.1} parent=23 // pred_check_branch
          %274 = sbr.rel (%p272) target = $region44
        $region43: #{tpu_custom_call.1} parent=23 // pred_region
          %276 = vsyncadd %s268, 0
          %s277 = smul.addr %s37, 8
          %s278 = scalar_lea.hbm %s3, %s277
          %s280 = sshll.u32 %s271, 4
          %s281 = int_to_ptr.vmem [resolvable:$true] %s280
          %s282 = sshll.u32 %s278, 4
          %s283 = int_to_ptr.hbm [resolvable:$true] %s282
          %285 = dma.vmem_to_hbm [thread:$0]  %s281, 128, %s283, %s268
        $region44: #{tpu_custom_call.1} parent=23 // pred_fallthru
          _
      $region24: #{tpu_custom_call.1} parent=5 // pred_fallthru
        _
      %p286 = scmp.le.s32.totalorder 2, %s28
      // Predicated region
      $region45: #{tpu_custom_call.1} parent=5 // pred_check
        %p287 = pneg %p286
      $region46: #{tpu_custom_call.1} parent=5 // pred_check_branch
        %289 = sbr.rel (%p287) target = $region48
      $region47: #{tpu_custom_call.1} parent=5 // pred_region
        %s290 = ssub.s32 %s28, 2
        // Predicated region
        $region49: #{tpu_custom_call.1} parent=47 // pred_check
          %p291 = pneg %p107
        $region50: #{tpu_custom_call.1} parent=47 // pred_check_branch
          %293 = sbr.rel (%p291) target = $region52
        $region51: #{tpu_custom_call.1} parent=47 // pred_region
          %s294 = sand.u32 %s92, 1
          %s295 = scalar_lea.sflag [#allocation8], %s294
          %s296 = sand.u32 %s92, 1
          %s297 = smul.addr %s296, 8
          %s298 = scalar_lea.vmem [#allocation9], %s297
          %300 = dma.done %s295, 128
        $region52: #{tpu_custom_call.1} parent=47 // pred_fallthru
          _
      $region48: #{tpu_custom_call.1} parent=5 // pred_fallthru
        _
    $region6: #{tpu_custom_call.1} parent=1 // loop_footer
      %s32 = sadd.s32 1, %s28
    $region7: #{tpu_custom_call.1} parent=1 // loop_footer_branch
      %27 = sbr.rel target = $region3
    $region8: #{tpu_custom_call.1} parent=1 // loop_exit
      _
    %301 = vsyncpa [#allocation7], 1
    %s302 = scalar_lea.sflag [#allocation7], 1
    %303 = vsyncpa %s302, 1
    %304 = vsyncpa [#allocation8], 1
    %s305 = scalar_lea.sflag [#allocation8], 1
    %306 = vsyncpa %s305, 1

</llo_original>
